<compile_context>
chip_gen: v6e
topology: v6e:2x2x1
jax: 0.10.0
libtpu: 0.0.40
codegen_flags: <defaults>
</compile_context>

<pallas_src>
import jax
import jax.numpy as jnp
from jax.experimental import pallas as pl
from jax.experimental.pallas import tpu as pltpu


_TARGET_BLOCK_BYTES = 4 * 1024 * 1024   # per-operand, per-block (perf review: 4-6 MiB)
_VMEM_LIMIT_BYTES = 40 << 20            # 24 MiB double-buffered footprint + headroom
_MIN_PALLAS_BYTES = 256 * 1024          # below this, plain (fusable) XLA wins


def _cast_offset(x, dtype):
    # Keep x a weak-typed Python scalar (lowers to an immediate). Guard the
    # integer-input case so the subtract doesn't promote past the output dtype.
    # TODO(synk): torch would promote int tensors to float for a float offset;
    # here the output dtype always matches the inputs.
    if jnp.issubdtype(jnp.dtype(dtype), jnp.integer):
        return int(x)
    return float(x)


def _make_qux_kernel(x, dtype):
    x_s = _cast_offset(x, dtype)

    def _qux_kernel(a_ref, b_ref, o_ref):
        o_ref[...] = (a_ref[...] - b_ref[...]) - x_s

    return _qux_kernel


def _sublane_pack(dtype) -> int:
    # Rows per packed vreg sublane group: f32 -> 8, bf16 -> 16, int8/fp8 -> 32.
    return 8 * max(1, 4 // jnp.dtype(dtype).itemsize)


def _qux_pallas_2d(a2, b2, x, *, target_block_bytes=_TARGET_BLOCK_BYTES):
    """Run the kernel on a lane-dense (rows, lane) slab."""
    rows, lane = a2.shape
    dtype = a2.dtype
    itemsize = jnp.dtype(dtype).itemsize
    pack = _sublane_pack(dtype)
    n = rows * lane

    # ~target_block_bytes per operand per block, aligned to the sublane pack.
    tile_r = (target_block_bytes // (lane * itemsize)) // pack * pack
    tile_r = max(pack, tile_r)
    if tile_r >= rows:
        tile_r = rows  # single full-extent block (always a legal block shape)
    elif rows % tile_r != 0:
        # Nudge down to a divisor of rows (still a pack multiple) so there is
        # no masked-store / short-DMA final block.
        for cand in range(tile_r, max(pack, tile_r // 2) - 1, -pack):
            if rows % cand == 0:
                tile_r = cand
                break

    grid = (pl.cdiv(rows, tile_r),)

    def build(dim_sem):
        return pl.pallas_call(
            _make_qux_kernel(x, dtype),
            out_shape=jax.ShapeDtypeStruct((rows, lane), dtype),
            grid=grid,
            in_specs=[
                pl.BlockSpec((tile_r, lane), lambda i: (i, 0)),  # a
                pl.BlockSpec((tile_r, lane), lambda i: (i, 0)),  # b
            ],
            out_specs=pl.BlockSpec((tile_r, lane), lambda i: (i, 0)),
            compiler_params=pltpu.CompilerParams(
                dimension_semantics=(dim_sem,),
                vmem_limit_bytes=_VMEM_LIMIT_BYTES,
            ),
            cost_estimate=pl.CostEstimate(
                flops=2 * n,
                transcendentals=0,
                bytes_accessed=3 * n * itemsize,
            ),
        )

    # v7x: CORE_PARALLEL actually shards the row-tile loop across both
    # TensorCores (separate DMA/HBM paths). Fall back to plain "parallel" if a
    # given generation / grid shape rejects the core-parallel lowering.
    try:
        return build(pltpu.CORE_PARALLEL)(a2, b2)
    except Exception:
        return build("parallel")(a2, b2)


def qux_forward(a, b, x, *, min_pallas_bytes=_MIN_PALLAS_BYTES,
                target_block_bytes=_TARGET_BLOCK_BYTES):
    """Compute a - b - x (x is the module's self.x, a Python scalar)."""
    assert a.shape == b.shape and a.dtype == b.dtype
    orig_shape = a.shape
    dtype = a.dtype
    n = a.size
    itemsize = jnp.dtype(dtype).itemsize
    x_s = _cast_offset(x, dtype)

    # Tiny activations: fixed pallas_call launch/pipeline overhead exceeds the
    # work, and plain XLA can fuse the subtract into neighbors for free.
    if n * itemsize < min_pallas_bytes:
        return a - b - x_s

    # Widest lane-dense slab whose width divides n (free reshape, no copies).
    lane = next((c for c in (1024, 512, 256, 128) if n % c == 0), None)
    if lane is not None:
        rows = n // lane
        out2 = _qux_pallas_2d(a.reshape(rows, lane), b.reshape(rows, lane), x,
                              target_block_bytes=target_block_bytes)
        return out2.reshape(orig_shape)

    # Ragged n: kernel on the 128-aligned bulk, <128-element tail in plain JAX
    # (avoids the pad + trim path, which doubles HBM traffic on a mem-bound op).
    bulk = (n // 128) * 128
    a_flat = a.reshape(-1)
    b_flat = b.reshape(-1)
    tail = a_flat[bulk:] - b_flat[bulk:] - x_s
    if bulk == 0:
        return tail.reshape(orig_shape)
    out_bulk = _qux_pallas_2d(a_flat[:bulk].reshape(-1, 128),
                              b_flat[:bulk].reshape(-1, 128), x,
                              target_block_bytes=target_block_bytes)
    return jnp.concatenate([out_bulk.reshape(-1), tail]).reshape(orig_shape)


if __name__ == "__main__":
    key = jax.random.PRNGKey(0)
    ka, kb = jax.random.split(key)

    # Small NCHW-like activations consistent with the elementwise module.
    shape = (2, 4, 16, 16)
    a = jax.random.normal(ka, shape, dtype=jnp.float32)
    b = jax.random.normal(kb, shape, dtype=jnp.float32)
    x = 3.0  # the value passed to Qux.__init__ (deterministic, in-script)

    ref = a - b - x

    # 1) Force the Pallas kernel path on the small activation.
    out = jax.block_until_ready(qux_forward(a, b, x, min_pallas_bytes=0))
    assert out.shape == shape and out.dtype == jnp.float32
    assert jnp.allclose(out, ref, atol=1e-6, rtol=1e-6)

    # 2) Default path (small-input fallback); identical semantics.
    out_def = jax.block_until_ready(qux_forward(a, b, x))
    assert jnp.allclose(out_def, ref, atol=1e-6, rtol=1e-6)

    # 3) Ragged-size input exercises the bulk(kernel) + tail(plain JAX) split.
    shape_r = (3, 7, 19)  # 399 elements -> 384 through the kernel + 15 tail
    ar = jax.random.normal(ka, shape_r, dtype=jnp.float32)
    br = jax.random.normal(kb, shape_r, dtype=jnp.float32)
    out_r = jax.block_until_ready(qux_forward(ar, br, x, min_pallas_bytes=0))
    assert jnp.allclose(out_r, ar - br - x, atol=1e-6, rtol=1e-6)

    print("KERNEL_OK")
</pallas_src>

<mosaic_0001>
module attributes {stable_mosaic.version = 11 : i64} {
  func.func @_qux_kernel(%arg0: i32, %arg1: memref<2x1024xf32, #tpu.memory_space<vmem>>, %arg2: memref<2x1024xf32, #tpu.memory_space<vmem>>, %arg3: memref<2x1024xf32, #tpu.memory_space<vmem>>) attributes {dimension_semantics = [#tpu.dimension_semantics<core_parallel>], iteration_bounds = array<i64: 1>, scalar_prefetch = 0 : i64, scratch_operands = 0 : i64, tpu.core_type = #tpu.core_type<tc>, window_params = [{transform_indices = @transform_0, window_bounds = array<i64: 2, 1024>}, {transform_indices = @transform_1, window_bounds = array<i64: 2, 1024>}, {transform_indices = @transform_2, window_bounds = array<i64: 2, 1024>}]} {
    %c0 = arith.constant 0 : index
    %c0_0 = arith.constant 0 : index
    %0 = vector.load %arg1[%c0, %c0_0] : memref<2x1024xf32, #tpu.memory_space<vmem>>, vector<2x1024xf32>
    %c0_1 = arith.constant 0 : index
    %c0_2 = arith.constant 0 : index
    %1 = vector.load %arg2[%c0_1, %c0_2] : memref<2x1024xf32, #tpu.memory_space<vmem>>, vector<2x1024xf32>
    %2 = arith.subf %0, %1 : vector<2x1024xf32>
    %cst = arith.constant 3.000000e+00 : f32
    %3 = vector.broadcast %cst : f32 to vector<2x1024xf32>
    %4 = arith.subf %2, %3 : vector<2x1024xf32>
    %c0_3 = arith.constant 0 : index
    %c0_4 = arith.constant 0 : index
    %5 = vector.load %arg3[%c0_3, %c0_4] : memref<2x1024xf32, #tpu.memory_space<vmem>>, vector<2x1024xf32>
    tpu.vector_store %arg3[%c0_3, %c0_4], %4 {strides = array<i32>} : memref<2x1024xf32, #tpu.memory_space<vmem>>, vector<2x1024xf32>,
    return
  }
  func.func @transform_0(%arg0: i32) -> (i32, i32) {
    %c0_i32 = arith.constant 0 : i32
    %c0_i32_0 = arith.constant 0 : i32
    return %arg0, %c0_i32 : i32, i32
  }
  func.func @transform_1(%arg0: i32) -> (i32, i32) {
    %c0_i32 = arith.constant 0 : i32
    %c0_i32_0 = arith.constant 0 : i32
    return %arg0, %c0_i32 : i32, i32
  }
  func.func @transform_2(%arg0: i32) -> (i32, i32) {
    %c0_i32 = arith.constant 0 : i32
    %c0_i32_0 = arith.constant 0 : i32
    return %arg0, %c0_i32 : i32, i32
  }
}

module attributes {stable_mosaic.version = 11 : i64} {
  func.func @_qux_kernel(%arg0: i32, %arg1: memref<2x1024xf32, #tpu.memory_space<vmem>>, %arg2: memref<2x1024xf32, #tpu.memory_space<vmem>>, %arg3: memref<2x1024xf32, #tpu.memory_space<vmem>>) attributes {dimension_semantics = [#tpu.dimension_semantics<parallel>], iteration_bounds = array<i64: 1>, scalar_prefetch = 0 : i64, scratch_operands = 0 : i64, tpu.core_type = #tpu.core_type<tc>, window_params = [{transform_indices = @transform_0, window_bounds = array<i64: 2, 1024>}, {transform_indices = @transform_1, window_bounds = array<i64: 2, 1024>}, {transform_indices = @transform_2, window_bounds = array<i64: 2, 1024>}]} {
    %c0 = arith.constant 0 : index
    %c0_0 = arith.constant 0 : index
    %0 = vector.load %arg1[%c0, %c0_0] : memref<2x1024xf32, #tpu.memory_space<vmem>>, vector<2x1024xf32>
    %c0_1 = arith.constant 0 : index
    %c0_2 = arith.constant 0 : index
    %1 = vector.load %arg2[%c0_1, %c0_2] : memref<2x1024xf32, #tpu.memory_space<vmem>>, vector<2x1024xf32>
    %2 = arith.subf %0, %1 : vector<2x1024xf32>
    %cst = arith.constant 3.000000e+00 : f32
    %3 = vector.broadcast %cst : f32 to vector<2x1024xf32>
    %4 = arith.subf %2, %3 : vector<2x1024xf32>
    %c0_3 = arith.constant 0 : index
    %c0_4 = arith.constant 0 : index
    %5 = vector.load %arg3[%c0_3, %c0_4] : memref<2x1024xf32, #tpu.memory_space<vmem>>, vector<2x1024xf32>
    tpu.vector_store %arg3[%c0_3, %c0_4], %4 {strides = array<i32>} : memref<2x1024xf32, #tpu.memory_space<vmem>>, vector<2x1024xf32>,
    return
  }
  func.func @transform_0(%arg0: i32) -> (i32, i32) {
    %c0_i32 = arith.constant 0 : i32
    %c0_i32_0 = arith.constant 0 : i32
    return %arg0, %c0_i32 : i32, i32
  }
  func.func @transform_1(%arg0: i32) -> (i32, i32) {
    %c0_i32 = arith.constant 0 : i32
    %c0_i32_0 = arith.constant 0 : i32
    return %arg0, %c0_i32 : i32, i32
  }
  func.func @transform_2(%arg0: i32) -> (i32, i32) {
    %c0_i32 = arith.constant 0 : i32
    %c0_i32_0 = arith.constant 0 : i32
    return %arg0, %c0_i32 : i32, i32
  }
}

</mosaic_0001>

<llo_original>
// kernel: tpu_custom_call.1
$region0: #{tpu_custom_call.1}
  #allocation0 [shape = 'u32[]', space=smem, size = 0x4, offset = 0x4, fixed_abs, tag = 'smem constant byte address 0x4 - core index']
  #allocation1 [shape = 'u32[144,128]{1,0:T(1,128)}', space=vmem, size = 0x12000, scoped, tag = 'internal scratch']
  %s0 = inlined_call_operand.hbm [shape: f32[2,1024], index: 0, kind: input, shape index: {}]
  %s1 = inlined_call_operand.hbm [shape: f32[2,1024], index: 1, kind: input, shape index: {}]
  %s2 = inlined_call_operand.hbm [shape: f32[2,1024], index: 2, kind: output, shape index: {}]
  %s3 = sld [smem:[#allocation0]]
  $region26: #{tpu_custom_call.1} parent=0
    _
  %s5 = ssub.s32 1, %s3
  %s6 = scalar_select 0, %s5, %s3
  $region1: #{tpu_custom_call.1} parent=0
    #allocation2 [shape = 'u8[8192]{0}', space=vmem, size = 0x2000, scoped, tag = 'input window, operand 0, single buffered']
    #allocation3 [shape = 's32[1]{0}', space=sflag, size = 0x4, scoped, tag = 'scoped memory for tpu_custom_call.1']
    #allocation4 [shape = 's32[1]{0}', space=sflag, size = 0x4, scoped, tag = 'scoped memory for tpu_custom_call.1']
    #allocation5 [shape = 'u8[8192]{0}', space=vmem, size = 0x2000, scoped, tag = 'input window, operand 1, single buffered']
    #allocation6 [shape = 's32[1]{0}', space=sflag, size = 0x4, scoped, tag = 'scoped memory for tpu_custom_call.1']
    #allocation7 [shape = 'u8[8192]{0}', space=vmem, size = 0x2000, scoped, tag = 'output window, operand 0, single buffered']
    %7 = vsyncpa [#allocation3], 0
    %8 = vsyncpa [#allocation6], 0
    %9 = vsyncpa [#allocation4], 0
    // Predicated region
    $region2: #{tpu_custom_call.1} parent=1 // pred_check
      _
    $region3: #{tpu_custom_call.1} parent=1 // pred_check_branch
      %11 = sbr.rel (0) target = $region5
    $region4: #{tpu_custom_call.1} parent=1 // pred_region
      %s13 = ssub.s32 256, 256
      %14 = vsyncadd [#allocation3], %s13
      %s15 = smul.addr %s6, 8
      %s16 = smul.addr %s15, 32
      %s17 = scalar_lea.hbm %s0, %s16
      %s19 = sshll.u32 [#allocation2], 4
      %s20 = int_to_ptr.vmem [resolvable:$true] %s19
      %22 = dma.hbm_to_vmem [thread:$0]  %s17, 256, %s20, [#allocation3]
    $region5: #{tpu_custom_call.1} parent=1 // pred_fallthru
      _
    // Predicated region
    $region6: #{tpu_custom_call.1} parent=1 // pred_check
      _
    $region7: #{tpu_custom_call.1} parent=1 // pred_check_branch
      %24 = sbr.rel (0) target = $region9
    $region8: #{tpu_custom_call.1} parent=1 // pred_region
      %s26 = ssub.s32 256, 256
      %27 = vsyncadd [#allocation6], %s26
      %s28 = smul.addr %s6, 8
      %s29 = smul.addr %s28, 32
      %s30 = scalar_lea.hbm %s1, %s29
      %s32 = sshll.u32 [#allocation5], 4
      %s33 = int_to_ptr.vmem [resolvable:$true] %s32
      %35 = dma.hbm_to_vmem [thread:$0]  %s30, 256, %s33, [#allocation6]
    $region9: #{tpu_custom_call.1} parent=1 // pred_fallthru
      _
    // Predicated region
    $region10: #{tpu_custom_call.1} parent=1 // pred_check
      _
    $region11: #{tpu_custom_call.1} parent=1 // pred_check_branch
      %37 = sbr.rel (0) target = $region13
    $region12: #{tpu_custom_call.1} parent=1 // pred_region
      %38 = dma.done [#allocation3], 256
    $region13: #{tpu_custom_call.1} parent=1 // pred_fallthru
      _
    // Predicated region
    $region14: #{tpu_custom_call.1} parent=1 // pred_check
      _
    $region15: #{tpu_custom_call.1} parent=1 // pred_check_branch
      %40 = sbr.rel (0) target = $region17
    $region16: #{tpu_custom_call.1} parent=1 // pred_region
      %41 = dma.done [#allocation6], 256
    $region17: #{tpu_custom_call.1} parent=1 // pred_fallthru
      _
    %v42 = vld [vmem:[#allocation2] sm:$0xff]
    %v43 = vld [vmem:[#allocation2 + $0x8] sm:$0xff]
    %v44 = vld [vmem:[#allocation5] sm:$0xff]
    %v45 = vld [vmem:[#allocation5 + $0x8] sm:$0xff]
    %v46 = vsub.f32 %v42, %v44
    %v47 = vsub.f32 %v43, %v45
    %v48 = vsub.f32 %v46, 3.0
    %v49 = vsub.f32 %v47, 3.0
    %50 = vst [vmem:[#allocation7] sm:$0xff] %v48
    %51 = vst [vmem:[#allocation7 + $0x8] sm:$0xff] %v49
    // Predicated region
    $region18: #{tpu_custom_call.1} parent=1 // pred_check
      _
    $region19: #{tpu_custom_call.1} parent=1 // pred_check_branch
      %53 = sbr.rel (0) target = $region21
    $region20: #{tpu_custom_call.1} parent=1 // pred_region
      %s55 = ssub.s32 256, 256
      %56 = vsyncadd [#allocation4], %s55
      %s57 = smul.addr %s6, 8
      %s58 = smul.addr %s57, 32
      %s59 = scalar_lea.hbm %s2, %s58
      %s61 = sshll.u32 [#allocation7], 4
      %s62 = int_to_ptr.vmem [resolvable:$true] %s61
      %64 = dma.vmem_to_hbm [thread:$0]  %s62, 256, %s59, [#allocation4]
    $region21: #{tpu_custom_call.1} parent=1 // pred_fallthru
      _
    // Predicated region
    $region22: #{tpu_custom_call.1} parent=1 // pred_check
      _
    $region23: #{tpu_custom_call.1} parent=1 // pred_check_branch
      %66 = sbr.rel (0) target = $region25
    $region24: #{tpu_custom_call.1} parent=1 // pred_region
      %67 = dma.done [#allocation4], 256
    $region25: #{tpu_custom_call.1} parent=1 // pred_fallthru
      _
    %68 = vsyncpa [#allocation3], 1
    %69 = vsyncpa [#allocation6], 1
    %70 = vsyncpa [#allocation4], 1

// kernel: tpu_custom_call.1
$region0: #{tpu_custom_call.1}
  #allocation0 [shape = 'u32[]', space=smem, size = 0x4, offset = 0x4, fixed_abs, tag = 'smem constant byte address 0x4 - core index']
  #allocation1 [shape = 'u32[144,128]{1,0:T(1,128)}', space=vmem, size = 0x12000, scoped, tag = 'internal scratch']
  %s0 = inlined_call_operand.hbm [shape: f32[2,1024], index: 0, kind: input, shape index: {}]
  %s1 = inlined_call_operand.hbm [shape: f32[2,1024], index: 1, kind: input, shape index: {}]
  %s2 = inlined_call_operand.hbm [shape: f32[2,1024], index: 2, kind: output, shape index: {}]
  %s3 = sld [smem:[#allocation0]]
  $region26: #{tpu_custom_call.1} parent=0
    _
  %s5 = ssub.s32 1, %s3
  %s6 = scalar_select 0, %s5, %s3
  $region1: #{tpu_custom_call.1} parent=0
    #allocation2 [shape = 'u8[8192]{0}', space=vmem, size = 0x2000, scoped, tag = 'input window, operand 0, single buffered']
    #allocation3 [shape = 's32[1]{0}', space=sflag, size = 0x4, scoped, tag = 'scoped memory for tpu_custom_call.1']
    #allocation4 [shape = 's32[1]{0}', space=sflag, size = 0x4, scoped, tag = 'scoped memory for tpu_custom_call.1']
    #allocation5 [shape = 'u8[8192]{0}', space=vmem, size = 0x2000, scoped, tag = 'input window, operand 1, single buffered']
    #allocation6 [shape = 's32[1]{0}', space=sflag, size = 0x4, scoped, tag = 'scoped memory for tpu_custom_call.1']
    #allocation7 [shape = 'u8[8192]{0}', space=vmem, size = 0x2000, scoped, tag = 'output window, operand 0, single buffered']
    %7 = vsyncpa [#allocation3], 0
    %8 = vsyncpa [#allocation6], 0
    %9 = vsyncpa [#allocation4], 0
    // Predicated region
    $region2: #{tpu_custom_call.1} parent=1 // pred_check
      _
    $region3: #{tpu_custom_call.1} parent=1 // pred_check_branch
      %11 = sbr.rel (0) target = $region5
    $region4: #{tpu_custom_call.1} parent=1 // pred_region
      %s13 = ssub.s32 256, 256
      %14 = vsyncadd [#allocation3], %s13
      %s16 = sshll.u32 [#allocation2], 4
      %s17 = int_to_ptr.vmem [resolvable:$true] %s16
      %19 = dma.hbm_to_vmem [thread:$0]  %s0, 256, %s17, [#allocation3]
    $region5: #{tpu_custom_call.1} parent=1 // pred_fallthru
      _
    // Predicated region
    $region6: #{tpu_custom_call.1} parent=1 // pred_check
      _
    $region7: #{tpu_custom_call.1} parent=1 // pred_check_branch
      %21 = sbr.rel (0) target = $region9
    $region8: #{tpu_custom_call.1} parent=1 // pred_region
      %s23 = ssub.s32 256, 256
      %24 = vsyncadd [#allocation6], %s23
      %s26 = sshll.u32 [#allocation5], 4
      %s27 = int_to_ptr.vmem [resolvable:$true] %s26
      %29 = dma.hbm_to_vmem [thread:$0]  %s1, 256, %s27, [#allocation6]
    $region9: #{tpu_custom_call.1} parent=1 // pred_fallthru
      _
    // Predicated region
    $region10: #{tpu_custom_call.1} parent=1 // pred_check
      _
    $region11: #{tpu_custom_call.1} parent=1 // pred_check_branch
      %31 = sbr.rel (0) target = $region13
    $region12: #{tpu_custom_call.1} parent=1 // pred_region
      %32 = dma.done [#allocation3], 256
    $region13: #{tpu_custom_call.1} parent=1 // pred_fallthru
      _
    // Predicated region
    $region14: #{tpu_custom_call.1} parent=1 // pred_check
      _
    $region15: #{tpu_custom_call.1} parent=1 // pred_check_branch
      %34 = sbr.rel (0) target = $region17
    $region16: #{tpu_custom_call.1} parent=1 // pred_region
      %35 = dma.done [#allocation6], 256
    $region17: #{tpu_custom_call.1} parent=1 // pred_fallthru
      _
    %v36 = vld [vmem:[#allocation2] sm:$0xff]
    %v37 = vld [vmem:[#allocation2 + $0x8] sm:$0xff]
    %v38 = vld [vmem:[#allocation5] sm:$0xff]
    %v39 = vld [vmem:[#allocation5 + $0x8] sm:$0xff]
    %v40 = vsub.f32 %v36, %v38
    %v41 = vsub.f32 %v37, %v39
    %v42 = vsub.f32 %v40, 3.0
    %v43 = vsub.f32 %v41, 3.0
    %44 = vst [vmem:[#allocation7] sm:$0xff] %v42
    %45 = vst [vmem:[#allocation7 + $0x8] sm:$0xff] %v43
    // Predicated region
    $region18: #{tpu_custom_call.1} parent=1 // pred_check
      _
    $region19: #{tpu_custom_call.1} parent=1 // pred_check_branch
      %47 = sbr.rel (0) target = $region21
    $region20: #{tpu_custom_call.1} parent=1 // pred_region
      %s49 = ssub.s32 256, 256
      %50 = vsyncadd [#allocation4], %s49
      %s52 = sshll.u32 [#allocation7], 4
      %s53 = int_to_ptr.vmem [resolvable:$true] %s52
      %55 = dma.vmem_to_hbm [thread:$0]  %s53, 256, %s2, [#allocation4]
    $region21: #{tpu_custom_call.1} parent=1 // pred_fallthru
      _
    // Predicated region
    $region22: #{tpu_custom_call.1} parent=1 // pred_check
      _
    $region23: #{tpu_custom_call.1} parent=1 // pred_check_branch
      %57 = sbr.rel (0) target = $region25
    $region24: #{tpu_custom_call.1} parent=1 // pred_region
      %58 = dma.done [#allocation4], 256
    $region25: #{tpu_custom_call.1} parent=1 // pred_fallthru
      _
    %59 = vsyncpa [#allocation3], 1
    %60 = vsyncpa [#allocation6], 1
    %61 = vsyncpa [#allocation4], 1

</llo_original>
